<compile_context>
chip_gen: v7x
topology: tpu7x:2x2x1
jax: 0.10.0
libtpu: 0.0.40
codegen_flags: <defaults>
</compile_context>

<pallas_src>
import jax
import jax.numpy as jnp
from jax import lax
from jax.experimental import pallas as pl
from jax.experimental.pallas import tpu as pltpu

EPS = 1e-5


def _stats_kernel(x_ref, sum_ref, ssq_ref):
    """Single-pass per-row sum and sum-of-squares, accumulated over the lane-tile axis."""
    @pl.when(pl.program_id(1) == 0)
    def _():
        sum_ref[...] = jnp.zeros_like(sum_ref)
        ssq_ref[...] = jnp.zeros_like(ssq_ref)

    x = x_ref[...].astype(jnp.float32)
    sum_ref[...] += jnp.sum(x, axis=1, keepdims=True)
    ssq_ref[...] += jnp.sum(x * x, axis=1, keepdims=True)


def _apply_kernel(x_ref, a_ref, s_ref, o_ref):
    """out = x * a + s with per-row (per (n,c)) fused scale/shift. 2 VPU ops/element."""
    o_ref[...] = (x_ref[...].astype(jnp.float32) * a_ref[...]
                  + s_ref[...]).astype(o_ref.dtype)


def _choose_block(dim, preferred, quantum):
    """Largest block <= preferred that is a multiple of `quantum` and divides `dim`;
    falls back to the full extent (always legal)."""
    if dim <= preferred:
        return dim
    t = (preferred // quantum) * quantum
    while t >= quantum:
        if dim % t == 0:
            return t
        t -= quantum
    return dim


def conditional_batchnorm2d(x, c, fc_weight, fc_bias):
    """x: (N, C, H, W); c: (N, D); fc_weight: (2C, D) [PyTorch layout]; fc_bias: (2C,)."""
    N, C, H, W = x.shape
    HW = H * W
    R = N * C

    # Lane-dense 2D view; keep the caller's dtype (no extra HBM cast pass).
    x2d = x.reshape(R, HW)

    # Tile sizes: lane tile a multiple of 128 (~512 lanes), sublane tile a multiple of 8.
    # Sized well under the v7x 64 MiB VMEM budget with double-buffering.
    tl = _choose_block(HW, 512, 128)
    tr = _choose_block(R, 256, 8)
    grid = (R // tr, HW // tl)

    # ---------------- phase 1: per-(n,c) single-pass statistics ----------------
    row_sum, row_ssq = pl.pallas_call(
        _stats_kernel,
        out_shape=(jax.ShapeDtypeStruct((R, 1), jnp.float32),
                   jax.ShapeDtypeStruct((R, 1), jnp.float32)),
        grid=grid,
        in_specs=[pl.BlockSpec((tr, tl), lambda i, j: (i, j))],
        out_specs=(pl.BlockSpec((tr, 1), lambda i, j: (i, 0)),
                   pl.BlockSpec((tr, 1), lambda i, j: (i, 0))),
        compiler_params=pltpu.CompilerParams(
            dimension_semantics=("parallel", "arbitrary")),
    )(x2d)

    # ------------- tiny per-(N,C) math: done once by XLA in the wrapper -------------
    count = jnp.float32(N * HW)
    ch_sum = row_sum.reshape(N, C).sum(axis=0)
    ch_ssq = row_ssq.reshape(N, C).sum(axis=0)
    mean = ch_sum / count                                     # (C,)
    # biased variance (PyTorch BN training-mode normalization); f32 accumulation,
    # clamp guards against tiny negative values from E[x^2]-E[x]^2 cancellation.
    var = jnp.maximum(ch_ssq / count - mean * mean, 0.0)      # (C,)

    # fc, pre-split so g and b come from two lane-aligned tiny matmuls.
    w32 = fc_weight.astype(jnp.float32)
    c32 = c.astype(jnp.float32)
    g = c32 @ w32[:C].T + fc_bias[:C].astype(jnp.float32)     # (N, C)
    b = c32 @ w32[C:].T + fc_bias[C:].astype(jnp.float32)     # (N, C)

    # Fold BN + conditional affine: out = x * a + s
    inv = lax.rsqrt(var + EPS)                                # (C,)
    a = g * inv                                               # (N, C)
    s = b - mean * a                                          # (N, C)
    a2d = a.reshape(R, 1)
    s2d = s.reshape(R, 1)

    # ---------------- phase 2: elementwise apply, fully parallel tiles ----------------
    out2d = pl.pallas_call(
        _apply_kernel,
        out_shape=jax.ShapeDtypeStruct((R, HW), x.dtype),
        grid=grid,
        in_specs=[pl.BlockSpec((tr, tl), lambda i, j: (i, j)),
                  pl.BlockSpec((tr, 1), lambda i, j: (i, 0)),
                  pl.BlockSpec((tr, 1), lambda i, j: (i, 0))],
        out_specs=pl.BlockSpec((tr, tl), lambda i, j: (i, j)),
        compiler_params=pltpu.CompilerParams(
            dimension_semantics=("parallel", "parallel")),
    )(x2d, a2d, s2d)

    return out2d.reshape(N, C, H, W)


def _reference(x, c, fc_weight, fc_bias):
    # pure-JAX reference mirroring the PyTorch forward
    N, C, H, W = x.shape
    cc = c @ fc_weight.T + fc_bias
    g = cc[:, :C].reshape(N, C, 1, 1)
    b = cc[:, C:].reshape(N, C, 1, 1)
    mean = jnp.mean(x, axis=(0, 2, 3), keepdims=True)
    var = jnp.mean((x - mean) ** 2, axis=(0, 2, 3), keepdims=True)
    xh = (x - mean) / jnp.sqrt(var + EPS)
    return xh * g + b


if __name__ == "__main__":
    # Small shapes consistent with the module: batch=2, channels=4, spatial=16, cond dim d=8
    N, IC, H, W, D = 2, 4, 16, 16, 8

    key = jax.random.PRNGKey(0)
    kx, kc, kb = jax.random.split(key, 3)

    x = jax.random.normal(kx, (N, IC, H, W), dtype=jnp.float32)
    c = jax.random.normal(kc, (N, D), dtype=jnp.float32)

    # fc parameters, deterministic, matching the module's __init__:
    #   weight shape (2*ic, d); weight[:, :ic] = 1, weight[:, ic:] = 0
    fc_weight = jnp.concatenate(
        [jnp.ones((2 * IC, IC), jnp.float32),
         jnp.zeros((2 * IC, D - IC), jnp.float32)], axis=1)
    # bias: PyTorch default uniform(-1/sqrt(d), 1/sqrt(d)), drawn deterministically here
    bound = 1.0 / jnp.sqrt(jnp.float32(D))
    fc_bias = jax.random.uniform(kb, (2 * IC,), jnp.float32, -bound, bound)

    out = conditional_batchnorm2d(x, c, fc_weight, fc_bias)
    out = jax.block_until_ready(out)

    ref = _reference(x, c, fc_weight, fc_bias)
    assert out.shape == (N, IC, H, W)
    assert jnp.allclose(out, ref, atol=1e-4, rtol=1e-4)

    print("KERNEL_OK")
</pallas_src>

<mosaic_0001>
module attributes {stable_mosaic.version = 11 : i64} {
  func.func @_stats_kernel(%arg0: i32, %arg1: i32, %arg2: memref<8x256xf32, #tpu.memory_space<vmem>>, %arg3: memref<8x1xf32, #tpu.memory_space<vmem>>, %arg4: memref<8x1xf32, #tpu.memory_space<vmem>>) attributes {dimension_semantics = [#tpu.dimension_semantics<parallel>, #tpu.dimension_semantics<arbitrary>], iteration_bounds = array<i64: 1, 1>, scalar_prefetch = 0 : i64, scratch_operands = 0 : i64, tpu.core_type = #tpu.core_type<tc>, window_params = [{transform_indices = @transform_0, window_bounds = array<i64: 8, 256>}, {transform_indices = @transform_1, window_bounds = array<i64: 8, 1>}, {transform_indices = @transform_2, window_bounds = array<i64: 8, 1>}]} {
    %c0_i32 = arith.constant 0 : i32
    %0 = arith.cmpi eq, %arg1, %c0_i32 : i32
    %1 = arith.extui %0 : i1 to i32
    %c0_i32_0 = arith.constant 0 : i32
    %2 = arith.cmpi ne, %1, %c0_i32_0 : i32
    scf.if %2 {
      %cst_11 = arith.constant 0.000000e+00 : f32
      %15 = vector.broadcast %cst_11 : f32 to vector<8x1xf32>
      %c0_12 = arith.constant 0 : index
      %c0_13 = arith.constant 0 : index
      %16 = vector.load %arg3[%c0_12, %c0_13] : memref<8x1xf32, #tpu.memory_space<vmem>>, vector<8x1xf32>
      tpu.vector_store %arg3[%c0_12, %c0_13], %15 {strides = array<i32>} : memref<8x1xf32, #tpu.memory_space<vmem>>, vector<8x1xf32>,
      %cst_14 = arith.constant 0.000000e+00 : f32
      %17 = vector.broadcast %cst_14 : f32 to vector<8x1xf32>
      %c0_15 = arith.constant 0 : index
      %c0_16 = arith.constant 0 : index
      %18 = vector.load %arg4[%c0_15, %c0_16] : memref<8x1xf32, #tpu.memory_space<vmem>>, vector<8x1xf32>
      tpu.vector_store %arg4[%c0_15, %c0_16], %17 {strides = array<i32>} : memref<8x1xf32, #tpu.memory_space<vmem>>, vector<8x1xf32>,
    } else {
    }
    %c0 = arith.constant 0 : index
    %c0_1 = arith.constant 0 : index
    %3 = vector.load %arg2[%c0, %c0_1] : memref<8x256xf32, #tpu.memory_space<vmem>>, vector<8x256xf32>
    %c0_2 = arith.constant 0 : index
    %c0_3 = arith.constant 0 : index
    %4 = vector.load %arg3[%c0_2, %c0_3] : memref<8x1xf32, #tpu.memory_space<vmem>>, vector<8x1xf32>
    %cst = arith.constant dense<0.000000e+00> : vector<8xf32>
    %5 = vector.multi_reduction <add>, %3, %cst [1] : vector<8x256xf32> to vector<8xf32>
    %6 = vector.shape_cast %5 : vector<8xf32> to vector<8x1xf32>
    %7 = arith.addf %4, %6 : vector<8x1xf32>
    %c0_4 = arith.constant 0 : index
    %c0_5 = arith.constant 0 : index
    %8 = vector.load %arg3[%c0_4, %c0_5] : memref<8x1xf32, #tpu.memory_space<vmem>>, vector<8x1xf32>
    tpu.vector_store %arg3[%c0_4, %c0_5], %7 {strides = array<i32>} : memref<8x1xf32, #tpu.memory_space<vmem>>, vector<8x1xf32>,
    %c0_6 = arith.constant 0 : index
    %c0_7 = arith.constant 0 : index
    %9 = vector.load %arg4[%c0_6, %c0_7] : memref<8x1xf32, #tpu.memory_space<vmem>>, vector<8x1xf32>
    %10 = arith.mulf %3, %3 : vector<8x256xf32>
    %cst_8 = arith.constant dense<0.000000e+00> : vector<8xf32>
    %11 = vector.multi_reduction <add>, %10, %cst_8 [1] : vector<8x256xf32> to vector<8xf32>
    %12 = vector.shape_cast %11 : vector<8xf32> to vector<8x1xf32>
    %13 = arith.addf %9, %12 : vector<8x1xf32>
    %c0_9 = arith.constant 0 : index
    %c0_10 = arith.constant 0 : index
    %14 = vector.load %arg4[%c0_9, %c0_10] : memref<8x1xf32, #tpu.memory_space<vmem>>, vector<8x1xf32>
    tpu.vector_store %arg4[%c0_9, %c0_10], %13 {strides = array<i32>} : memref<8x1xf32, #tpu.memory_space<vmem>>, vector<8x1xf32>,
    return
  }
  func.func @transform_0(%arg0: i32, %arg1: i32) -> (i32, i32) {
    %c0_i32 = arith.constant 0 : i32
    return %arg0, %arg1 : i32, i32
  }
  func.func @transform_1(%arg0: i32, %arg1: i32) -> (i32, i32) {
    %c0_i32 = arith.constant 0 : i32
    %c0_i32_0 = arith.constant 0 : i32
    return %arg0, %c0_i32 : i32, i32
  }
  func.func @transform_2(%arg0: i32, %arg1: i32) -> (i32, i32) {
    %c0_i32 = arith.constant 0 : i32
    %c0_i32_0 = arith.constant 0 : i32
    return %arg0, %c0_i32 : i32, i32
  }
}

</mosaic_0001>

<llo_original>
// kernel: tpu_custom_call.1
$region0: #{tpu_custom_call.1}
  #allocation0 [shape = 'u32[]', space=smem, size = 0x4, offset = 0x4, fixed_abs, tag = 'smem constant byte address 0x4 - core index']
  #allocation1 [shape = 'u32[144,128]{1,0:T(1,128)}', space=vmem, size = 0x12000, scoped, tag = 'internal scratch']
  %s0 = inlined_call_operand.hbm [shape: f32[8,256], index: 0, kind: input, shape index: {}]
  %s1 = inlined_call_operand.vmem [shape: f32[8,1], index: 1, kind: output, shape index: {0}]
  %s2 = inlined_call_operand.vmem [shape: f32[8,1], index: 2, kind: output, shape index: {1}]
  %3 = xla_tuple %s1, %s2
  %s4 = sld [smem:[#allocation0]]
  $region30: #{tpu_custom_call.1} parent=0
    _
  %s6 = ssub.s32 1, %s4
  %s7 = scalar_select 0, %s6, %s4
  $region1: #{tpu_custom_call.1} parent=0
    #allocation2 [shape = 'u8[8192]{0}', space=vmem, size = 0x2000, scoped, tag = 'input window, operand 0, single buffered']
    #allocation3 [shape = 's32[1]{0}', space=sflag, size = 0x4, scoped, tag = 'scoped memory for tpu_custom_call.1']
    %8 = vsyncpa [#allocation3], 0
    // Predicated region
    $region2: #{tpu_custom_call.1} parent=1 // pred_check
      _
    $region3: #{tpu_custom_call.1} parent=1 // pred_check_branch
      %10 = sbr.rel (0) target = $region5
    $region4: #{tpu_custom_call.1} parent=1 // pred_region
      %s12 = ssub.s32 256, 256
      %13 = vsyncadd [#allocation3], %s12
      %s15 = sshll.u32 [#allocation2], 4
      %s16 = int_to_ptr.vmem [resolvable:$true] %s15
      %18 = dma.hbm_to_vmem [thread:$0]  %s0, 256, %s16, [#allocation3]
    $region5: #{tpu_custom_call.1} parent=1 // pred_fallthru
      _
    // Predicated region
    $region6: #{tpu_custom_call.1} parent=1 // pred_check
      _
    $region7: #{tpu_custom_call.1} parent=1 // pred_check_branch
      %20 = sbr.rel (0) target = $region9
    $region8: #{tpu_custom_call.1} parent=1 // pred_region
      %21 = dma.done [#allocation3], 256
    $region9: #{tpu_custom_call.1} parent=1 // pred_fallthru
      _
    %p22 = scmp.eq.s32.totalorder 0, 0
    // Predicated region
    $region10: #{tpu_custom_call.1} parent=1 // pred_check
      %p23 = pneg %p22
    $region11: #{tpu_custom_call.1} parent=1 // pred_check_branch
      %25 = sbr.rel (%p23) target = $region13
    $region12: #{tpu_custom_call.1} parent=1 // pred_region
      %vm26 = vcmask 7168
      %27 = vst.msk [vmem:[%s1] sm:$0xff] %vm26, 0.0
      %28 = vst.msk [vmem:[%s2] sm:$0xff] %vm26, 0.0
    $region13: #{tpu_custom_call.1} parent=1 // pred_fallthru
      _
    %v29 = vld [vmem:[#allocation2] sm:$0xff]
    %v30 = vld [vmem:[#allocation2 + $0x8] sm:$0xff]
    %v31 = vld [vmem:[%s1] sm:$0xff]
    %v32 = vadd.f32 %v29, %v30
    %33 = vadd.xlane.f32.xlu0 %v32
    %v34 = vpop.xlane.xlu0 %33
    %v35 = vadd.f32 %v31, %v34
    %vm36 = vcmask 7168
    %37 = vst.msk [vmem:[%s1] sm:$0xff] %vm36, %v35
    %v38 = vld [vmem:[%s2] sm:$0xff]
    %v39 = vmul.f32 %v29, %v29
    %v40 = vmul.f32 %v30, %v30
    %v41 = vadd.f32 %v39, %v40
    %42 = vadd.xlane.f32.xlu0 %v41
    %v43 = vpop.xlane.xlu0 %42
    %v44 = vadd.f32 %v38, %v43
    %45 = vst.msk [vmem:[%s2] sm:$0xff] %vm36, %v44
    // Predicated region
    $region14: #{tpu_custom_call.1} parent=1 // pred_check
      _
    $region15: #{tpu_custom_call.1} parent=1 // pred_check_branch
      %47 = sbr.rel (0) target = $region17
    $region16: #{tpu_custom_call.1} parent=1 // pred_region
      _
    $region17: #{tpu_custom_call.1} parent=1 // pred_fallthru
      _
    // Predicated region
    $region18: #{tpu_custom_call.1} parent=1 // pred_check
      _
    $region19: #{tpu_custom_call.1} parent=1 // pred_check_branch
      %49 = sbr.rel (0) target = $region21
    $region20: #{tpu_custom_call.1} parent=1 // pred_region
      _
    $region21: #{tpu_custom_call.1} parent=1 // pred_fallthru
      _
    // Predicated region
    $region22: #{tpu_custom_call.1} parent=1 // pred_check
      _
    $region23: #{tpu_custom_call.1} parent=1 // pred_check_branch
      %51 = sbr.rel (0) target = $region25
    $region24: #{tpu_custom_call.1} parent=1 // pred_region
      _
    $region25: #{tpu_custom_call.1} parent=1 // pred_fallthru
      _
    // Predicated region
    $region26: #{tpu_custom_call.1} parent=1 // pred_check
      _
    $region27: #{tpu_custom_call.1} parent=1 // pred_check_branch
      %53 = sbr.rel (0) target = $region29
    $region28: #{tpu_custom_call.1} parent=1 // pred_region
      _
    $region29: #{tpu_custom_call.1} parent=1 // pred_fallthru
      _
    %54 = vsyncpa [#allocation3], 1

</llo_original>
